<compile_context>
chip_gen: v7x
topology: tpu7x:2x2x1
jax: 0.10.0
libtpu: 0.0.40
codegen_flags: <defaults>
</compile_context>

<pallas_src>
import functools
import math

import jax
import jax.numpy as jnp
from jax.experimental import pallas as pl
from jax.experimental.pallas import tpu as pltpu


def _round_up(a, b):
    return ((a + b - 1) // b) * b


def _device_kind():
    try:
        return jax.devices()[0].device_kind.lower()
    except Exception:
        return ""


def _default_matmul_dtype():
    """bf16 MXU operands on any TPU (incl. v5e); f32 only for unknown backends."""
    kind = _device_kind()
    if "tpu" in kind or any(t in kind for t in ("v5", "v6", "v7")):
        return jnp.bfloat16
    return jnp.float32


def _pick_tile_rows(rows, seq_len, target):
    """Row-tile size: a multiple of lcm(T, 8) (sequence- and sublane-aligned),
    capped at `target` and at the rounded-up total row count.  The caller pads
    the row axis up to a multiple of the returned tile, so awkward batch sizes
    never silently fall back to 'whole batch in one tile'."""
    unit = math.lcm(seq_len, 8)
    tile = max(unit, (target // unit) * unit)
    tile = min(tile, _round_up(rows, unit))
    return tile


# ----------------------------- Pallas kernel -------------------------------

def bow_kernel(mm_dtype, x_ref, att_ref, wfc_ref, bfc_ref, wproj_ref,
               bproj_ref, whead_ref, bhead_ref, logits_ref, x2_ref):
    # Grid = (row_tiles, vocab_tiles); the vocab axis only changes the lm_head
    # slice, so the CausalBow + MLP trunk runs once per row tile (v == 0) and
    # is cached in the x2 VMEM scratch across the vocab tiles.
    @pl.when(pl.program_id(1) == 0)
    def _trunk():
        x = x_ref[...]                                        # (R, Cp) f32

        # CausalBow: per-sequence causal average via a precomputed block-
        # diagonal operator -- one MXU matmul, kept in f32 (cheap; avoids
        # bf16-rounding the 1/(t+1) coefficients).
        # TODO(synk): if the bundle dump shows vmatmul as the binding slot,
        # replace with a log2(T)-step masked pltpu.roll prefix sum (XLU/VPU),
        # which scales linearly with tile_rows instead of quadratically.
        y = jnp.dot(att_ref[...], x, preferred_element_type=jnp.float32)
        x1 = x + y                                            # residual 1

        # MLP: c_proj(tanh(c_fc(x1))) + residual (weights pre-transposed and
        # lane-padded; bf16 operands with f32 accumulation).
        h = jnp.tanh(jnp.dot(x1.astype(mm_dtype), wfc_ref[...],
                             preferred_element_type=jnp.float32) + bfc_ref[...])
        mlp_out = jnp.dot(h.astype(mm_dtype), wproj_ref[...],
                          preferred_element_type=jnp.float32) + bproj_ref[...]
        x2_ref[...] = x1 + mlp_out                            # residual 2

    # lm_head over the current vocab tile (lane-dense store).
    logits = jnp.dot(x2_ref[...].astype(mm_dtype), whead_ref[...],
                     preferred_element_type=jnp.float32) + bhead_ref[...]
    logits_ref[...] = logits.astype(logits_ref.dtype)


def bow_forward_pallas(x, params, *, matmul_dtype=None, tile_rows_target=256,
                       tile_v_target=512):
    """x: (B, T, C) float32 embeddings (tok+pos). Returns logits (B, T, V)."""
    B, T, C = x.shape
    wfc, bfc = params["wfc"], params["bfc"]            # (C2, C), (1, C2)
    wproj, bproj = params["wproj"], params["bproj"]    # (C, C2), (1, C)
    whead, bhead = params["whead"], params["bhead"]    # (V, C), (1, V)
    C2 = wfc.shape[0]
    V = whead.shape[0]
    if matmul_dtype is None:
        matmul_dtype = _default_matmul_dtype()

    # --- host-side layout prep (one-time, outside the kernel) ---------------
    rows = B * T
    tile_rows = _pick_tile_rows(rows, T, tile_rows_target)
    padded_rows = _round_up(rows, tile_rows)
    n_row_tiles = padded_rows // tile_rows

    Cp = _round_up(C, 128)                      # lane-dense embed dim
    C2p = _round_up(C2, 128)                    # lane-dense hidden dim
    Vp0 = _round_up(V, 128)
    tile_v = min(Vp0, _round_up(tile_v_target, 128))
    Vp = _round_up(Vp0, tile_v)                 # lane-dense, tileable vocab
    n_v_tiles = Vp // tile_v

    xr = x.reshape(rows, C).astype(jnp.float32)
    xr = jnp.pad(xr, ((0, padded_rows - rows), (0, Cp - C)))

    # Constant causal-average operator: att_T[t, s] = 1/(t+1) for s <= t,
    # block-diagonal over the sequences packed into one row tile (f32).
    att_T = jnp.tril(jnp.ones((T, T), jnp.float32)) / \
        jnp.arange(1, T + 1, dtype=jnp.float32)[:, None]
    att_block = jnp.kron(jnp.eye(tile_rows // T, dtype=jnp.float32), att_T)

    # Pre-transposed, zero-padded weights (contraction dim lane-contiguous;
    # all matmul dims padded to multiples of 128 for lane-dense MXU use).
    wfc_t = jnp.pad(wfc.T, ((0, Cp - C), (0, C2p - C2))).astype(matmul_dtype)
    wproj_t = jnp.pad(wproj.T, ((0, C2p - C2), (0, Cp - C))).astype(matmul_dtype)
    whead_t = jnp.pad(whead.T, ((0, Cp - C), (0, Vp - V))).astype(matmul_dtype)
    bfc_p = jnp.pad(bfc, ((0, 0), (0, C2p - C2))).astype(jnp.float32)
    bproj_p = jnp.pad(bproj, ((0, 0), (0, Cp - C))).astype(jnp.float32)
    bhead_p = jnp.pad(bhead, ((0, 0), (0, Vp - V))).astype(jnp.float32)

    # Explicit scoped-VMEM budget, sized from the actual buffers + headroom.
    mm_bytes = jnp.dtype(matmul_dtype).itemsize
    est = (
        2 * tile_rows * Cp * 4                    # x row tile (f32, 2 bufs)
        + 2 * tile_rows * tile_rows * 4           # causal-avg operator (f32)
        + 2 * (Cp * C2p + C2p * Cp) * mm_bytes    # wfc^T, wproj^T
        + 2 * (C2p + Cp) * 4                      # bfc, bproj
        + 2 * Cp * tile_v * mm_bytes              # whead^T vocab tile
        + 2 * tile_v * 4                          # bhead vocab tile
        + 2 * tile_rows * tile_v * 4              # logits output tile
        + tile_rows * Cp * 4                      # x2 scratch
    )
    kind = _device_kind()
    if "v7" in kind:
        vmem_cap = 56 * 1024 * 1024               # 64 MiB physical / TC
    elif "tpu" in kind:
        vmem_cap = 100 * 1024 * 1024              # 128 MiB physical (v5e/v6e)
    else:
        vmem_cap = 64 * 1024 * 1024
    vmem_limit = int(min(vmem_cap, max(est * 3 // 2, 32 * 1024 * 1024)))

    const2 = lambda r, v: (0, 0)
    grid_spec = pltpu.PrefetchScalarGridSpec(
        num_scalar_prefetch=0,
        grid=(n_row_tiles, n_v_tiles),
        in_specs=[
            pl.BlockSpec((tile_rows, Cp), lambda r, v: (r, 0)),      # x rows
            pl.BlockSpec((tile_rows, tile_rows), const2),            # causal op
            pl.BlockSpec((Cp, C2p), const2),                         # wfc^T
            pl.BlockSpec((1, C2p), const2),                          # bfc
            pl.BlockSpec((C2p, Cp), const2),                         # wproj^T
            pl.BlockSpec((1, Cp), const2),                           # bproj
            pl.BlockSpec((Cp, tile_v), lambda r, v: (0, v)),         # whead^T
            pl.BlockSpec((1, tile_v), lambda r, v: (0, v)),          # bhead
        ],
        out_specs=pl.BlockSpec((tile_rows, tile_v), lambda r, v: (r, v)),
        scratch_shapes=[pltpu.VMEM((tile_rows, Cp), jnp.float32)],   # x2 cache
    )
    # TODO(synk): constant-index weight specs could be single-buffered
    # (pipeline_mode=pl.Buffered(1)) to halve resident-weight VMEM once that
    # path is verified on the target jax build.

    logits_flat = pl.pallas_call(
        functools.partial(bow_kernel, matmul_dtype),
        out_shape=jax.ShapeDtypeStruct((padded_rows, Vp), jnp.float32),
        grid_spec=grid_spec,
        compiler_params=pltpu.CompilerParams(
            dimension_semantics=("parallel", "arbitrary"),
            vmem_limit_bytes=vmem_limit),
    )(xr, att_block, wfc_t, bfc_p, wproj_t, bproj_p, whead_t, bhead_p)

    if padded_rows != rows or Vp != V:
        logits_flat = logits_flat[:rows, :V]
    return logits_flat.reshape(B, T, V)


# ------------------------------- glue / model ------------------------------

def init_params(key, vocab_size, block_size, n_embd, n_embd2):
    ks = jax.random.split(key, 8)
    scale = 0.02
    return {
        "wte": scale * jax.random.normal(ks[0], (vocab_size, n_embd), jnp.float32),
        "wpe": scale * jax.random.normal(ks[1], (block_size, n_embd), jnp.float32),
        # PyTorch nn.Linear convention: weight (out_features, in_features)
        "wfc": scale * jax.random.normal(ks[2], (n_embd2, n_embd), jnp.float32),
        "bfc": scale * jax.random.normal(ks[3], (1, n_embd2), jnp.float32),
        "wproj": scale * jax.random.normal(ks[4], (n_embd, n_embd2), jnp.float32),
        "bproj": scale * jax.random.normal(ks[5], (1, n_embd), jnp.float32),
        "whead": scale * jax.random.normal(ks[6], (vocab_size, n_embd), jnp.float32),
        "bhead": scale * jax.random.normal(ks[7], (1, vocab_size), jnp.float32),
    }


def bow_model(idx, params, *, matmul_dtype=None):
    """Full Bow.forward (logits only). idx: (B, T) int32 token ids."""
    B, T = idx.shape
    tok_emb = jnp.take(params["wte"], idx, axis=0)            # (B, T, C)
    pos_emb = params["wpe"][:T][None, :, :]                   # (1, T, C)
    x = (tok_emb + pos_emb).astype(jnp.float32)
    return bow_forward_pallas(x, params, matmul_dtype=matmul_dtype)
    # TODO(synk): cross-entropy loss branch (targets is not None) is not
    # implemented; the module returns loss=None when targets is None.


def bow_model_ref(idx, params):
    """Pure-JAX reference of the PyTorch forward, for verification."""
    B, T = idx.shape
    tok_emb = jnp.take(params["wte"], idx, axis=0)
    pos_emb = params["wpe"][:T][None, :, :]
    x = tok_emb + pos_emb
    mask = jnp.tril(jnp.ones((T, T), jnp.float32))
    att = jnp.where(mask == 0, -jnp.inf, 0.0)
    att = jax.nn.softmax(att, axis=-1)
    y = jnp.einsum("ts,bsc->btc", att, x)
    x = x + y
    h = jnp.tanh(x @ params["wfc"].T + params["bfc"][0])
    x = x + (h @ params["wproj"].T + params["bproj"][0])
    logits = x @ params["whead"].T + params["bhead"][0]
    return logits


if __name__ == "__main__":
    # ModelConfig-equivalent small shapes
    vocab_size = 16
    block_size = 8
    n_embd = 32
    n_embd2 = 64
    B, T = 2, block_size

    key = jax.random.PRNGKey(0)
    pkey, ikey = jax.random.split(key)
    params = init_params(pkey, vocab_size, block_size, n_embd, n_embd2)
    idx = jax.random.randint(ikey, (B, T), 0, vocab_size, dtype=jnp.int32)

    mm_dtype = _default_matmul_dtype()
    logits = bow_model(idx, params, matmul_dtype=mm_dtype)
    logits = jax.block_until_ready(logits)

    ref = bow_model_ref(idx, params)
    assert logits.shape == (B, T, vocab_size)

    if mm_dtype == jnp.bfloat16:
        atol, rtol = 2e-3, 2e-2   # bf16 MXU operands, f32 accumulation
    else:
        atol, rtol = 1e-4, 1e-4
    assert jnp.allclose(logits, ref, atol=atol, rtol=rtol)

    print("KERNEL_OK")
</pallas_src>

<mosaic_0001>
module attributes {stable_mosaic.version = 11 : i64} {
  func.func @bow_kernel(%arg0: i32, %arg1: i32, %arg2: memref<16x128xf32, #tpu.memory_space<vmem>>, %arg3: memref<16x16xf32, #tpu.memory_space<vmem>>, %arg4: memref<128x128xf32, #tpu.memory_space<vmem>>, %arg5: memref<1x128xf32, #tpu.memory_space<vmem>>, %arg6: memref<128x128xf32, #tpu.memory_space<vmem>>, %arg7: memref<1x128xf32, #tpu.memory_space<vmem>>, %arg8: memref<128x128xf32, #tpu.memory_space<vmem>>, %arg9: memref<1x128xf32, #tpu.memory_space<vmem>>, %arg10: memref<16x128xf32, #tpu.memory_space<vmem>>, %arg11: memref<16x128xf32, #tpu.memory_space<vmem>>) attributes {dimension_semantics = [#tpu.dimension_semantics<parallel>, #tpu.dimension_semantics<arbitrary>], iteration_bounds = array<i64: 1, 1>, scalar_prefetch = 0 : i64, scratch_operands = 1 : i64, tpu.core_type = #tpu.core_type<tc>, window_params = [{transform_indices = @transform_0, window_bounds = array<i64: 16, 128>}, {pipeline_mode = #tpu.pipeline_mode<synchronous>, transform_indices = @transform_1, window_bounds = array<i64: 16, 16>}, {pipeline_mode = #tpu.pipeline_mode<synchronous>, transform_indices = @transform_2, window_bounds = array<i64: 128, 128>}, {pipeline_mode = #tpu.pipeline_mode<synchronous>, transform_indices = @transform_3, window_bounds = array<i64: 1, 128>}, {pipeline_mode = #tpu.pipeline_mode<synchronous>, transform_indices = @transform_4, window_bounds = array<i64: 128, 128>}, {pipeline_mode = #tpu.pipeline_mode<synchronous>, transform_indices = @transform_5, window_bounds = array<i64: 1, 128>}, {transform_indices = @transform_6, window_bounds = array<i64: 128, 128>}, {transform_indices = @transform_7, window_bounds = array<i64: 1, 128>}, {transform_indices = @transform_8, window_bounds = array<i64: 16, 128>}]} {
    %c0_i32 = arith.constant 0 : i32
    %0 = arith.cmpi eq, %arg1, %c0_i32 : i32
    %1 = arith.extui %0 : i1 to i32
    %c0_i32_0 = arith.constant 0 : i32
    %2 = arith.cmpi ne, %1, %c0_i32_0 : i32
    scf.if %2 {
      %c0_8 = arith.constant 0 : index
      %c0_9 = arith.constant 0 : index
      %10 = vector.load %arg2[%c0_8, %c0_9] : memref<16x128xf32, #tpu.memory_space<vmem>>, vector<16x128xf32>
      %c0_10 = arith.constant 0 : index
      %c0_11 = arith.constant 0 : index
      %11 = vector.load %arg3[%c0_10, %c0_11] : memref<16x16xf32, #tpu.memory_space<vmem>>, vector<16x16xf32>
      %cst_12 = arith.constant dense<0.000000e+00> : vector<16x128xf32>
      %12 = tpu.matmul %11, %10, %cst_12 {dimension_numbers = #tpu.dot_dimension_numbers<[1], [0], [0], [1], [0, 0, 1, 1], [], []>} : vector<16x16xf32>, vector<16x128xf32>, vector<16x128xf32> -> vector<16x128xf32>
      %13 = arith.addf %10, %12 : vector<16x128xf32>
      %c0_13 = arith.constant 0 : index
      %c0_14 = arith.constant 0 : index
      %14 = vector.load %arg4[%c0_13, %c0_14] : memref<128x128xf32, #tpu.memory_space<vmem>>, vector<128x128xf32>
      %cst_15 = arith.constant dense<0.000000e+00> : vector<16x128xf32>
      %15 = tpu.matmul %13, %14, %cst_15 {dimension_numbers = #tpu.dot_dimension_numbers<[1], [0], [0], [1], [0, 0, 1, 1], [], []>} : vector<16x128xf32>, vector<128x128xf32>, vector<16x128xf32> -> vector<16x128xf32>
      %c0_16 = arith.constant 0 : index
      %c0_17 = arith.constant 0 : index
      %16 = vector.load %arg5[%c0_16, %c0_17] : memref<1x128xf32, #tpu.memory_space<vmem>>, vector<1x128xf32>
      %17 = vector.broadcast %16 : vector<1x128xf32> to vector<16x128xf32>
      %18 = arith.addf %15, %17 : vector<16x128xf32>
      %19 = math.tanh %18 : vector<16x128xf32>
      %c0_18 = arith.constant 0 : index
      %c0_19 = arith.constant 0 : index
      %20 = vector.load %arg6[%c0_18, %c0_19] : memref<128x128xf32, #tpu.memory_space<vmem>>, vector<128x128xf32>
      %cst_20 = arith.constant dense<0.000000e+00> : vector<16x128xf32>
      %21 = tpu.matmul %19, %20, %cst_20 {dimension_numbers = #tpu.dot_dimension_numbers<[1], [0], [0], [1], [0, 0, 1, 1], [], []>} : vector<16x128xf32>, vector<128x128xf32>, vector<16x128xf32> -> vector<16x128xf32>
      %c0_21 = arith.constant 0 : index
      %c0_22 = arith.constant 0 : index
      %22 = vector.load %arg7[%c0_21, %c0_22] : memref<1x128xf32, #tpu.memory_space<vmem>>, vector<1x128xf32>
      %23 = vector.broadcast %22 : vector<1x128xf32> to vector<16x128xf32>
      %24 = arith.addf %21, %23 : vector<16x128xf32>
      %25 = arith.addf %13, %24 : vector<16x128xf32>
      %c0_23 = arith.constant 0 : index
      %c0_24 = arith.constant 0 : index
      %26 = vector.load %arg11[%c0_23, %c0_24] : memref<16x128xf32, #tpu.memory_space<vmem>>, vector<16x128xf32>
      tpu.vector_store %arg11[%c0_23, %c0_24], %25 {strides = array<i32>} : memref<16x128xf32, #tpu.memory_space<vmem>>, vector<16x128xf32>,
    } else {
    }
    %c0 = arith.constant 0 : index
    %c0_1 = arith.constant 0 : index
    %3 = vector.load %arg11[%c0, %c0_1] : memref<16x128xf32, #tpu.memory_space<vmem>>, vector<16x128xf32>
    %c0_2 = arith.constant 0 : index
    %c0_3 = arith.constant 0 : index
    %4 = vector.load %arg8[%c0_2, %c0_3] : memref<128x128xf32, #tpu.memory_space<vmem>>, vector<128x128xf32>
    %cst = arith.constant dense<0.000000e+00> : vector<16x128xf32>
    %5 = tpu.matmul %3, %4, %cst {dimension_numbers = #tpu.dot_dimension_numbers<[1], [0], [0], [1], [0, 0, 1, 1], [], []>} : vector<16x128xf32>, vector<128x128xf32>, vector<16x128xf32> -> vector<16x128xf32>
    %c0_4 = arith.constant 0 : index
    %c0_5 = arith.constant 0 : index
    %6 = vector.load %arg9[%c0_4, %c0_5] : memref<1x128xf32, #tpu.memory_space<vmem>>, vector<1x128xf32>
    %7 = vector.broadcast %6 : vector<1x128xf32> to vector<16x128xf32>
    %8 = arith.addf %5, %7 : vector<16x128xf32>
    %c0_6 = arith.constant 0 : index
    %c0_7 = arith.constant 0 : index
    %9 = vector.load %arg10[%c0_6, %c0_7] : memref<16x128xf32, #tpu.memory_space<vmem>>, vector<16x128xf32>
    tpu.vector_store %arg10[%c0_6, %c0_7], %8 {strides = array<i32>} : memref<16x128xf32, #tpu.memory_space<vmem>>, vector<16x128xf32>,
    return
  }
  func.func @transform_0(%arg0: i32, %arg1: i32) -> (i32, i32) {
    %c0_i32 = arith.constant 0 : i32
    %c0_i32_0 = arith.constant 0 : i32
    return %arg0, %c0_i32 : i32, i32
  }
  func.func @transform_1(%arg0: i32, %arg1: i32) -> (i32, i32) {
    %c0_i32 = arith.constant 0 : i32
    %c0_i32_0 = arith.constant 0 : i32
    %c0_i32_1 = arith.constant 0 : i32
    return %c0_i32, %c0_i32_0 : i32, i32
  }
  func.func @transform_2(%arg0: i32, %arg1: i32) -> (i32, i32) {
    %c0_i32 = arith.constant 0 : i32
    %c0_i32_0 = arith.constant 0 : i32
    %c0_i32_1 = arith.constant 0 : i32
    return %c0_i32, %c0_i32_0 : i32, i32
  }
  func.func @transform_3(%arg0: i32, %arg1: i32) -> (i32, i32) {
    %c0_i32 = arith.constant 0 : i32
    %c0_i32_0 = arith.constant 0 : i32
    %c0_i32_1 = arith.constant 0 : i32
    return %c0_i32, %c0_i32_0 : i32, i32
  }
  func.func @transform_4(%arg0: i32, %arg1: i32) -> (i32, i32) {
    %c0_i32 = arith.constant 0 : i32
    %c0_i32_0 = arith.constant 0 : i32
    %c0_i32_1 = arith.constant 0 : i32
    return %c0_i32, %c0_i32_0 : i32, i32
  }
  func.func @transform_5(%arg0: i32, %arg1: i32) -> (i32, i32) {
    %c0_i32 = arith.constant 0 : i32
    %c0_i32_0 = arith.constant 0 : i32
    %c0_i32_1 = arith.constant 0 : i32
    return %c0_i32, %c0_i32_0 : i32, i32
  }
  func.func @transform_6(%arg0: i32, %arg1: i32) -> (i32, i32) {
    %c0_i32 = arith.constant 0 : i32
    %c0_i32_0 = arith.constant 0 : i32
    return %c0_i32, %arg1 : i32, i32
  }
  func.func @transform_7(%arg0: i32, %arg1: i32) -> (i32, i32) {
    %c0_i32 = arith.constant 0 : i32
    %c0_i32_0 = arith.constant 0 : i32
    return %c0_i32, %arg1 : i32, i32
  }
  func.func @transform_8(%arg0: i32, %arg1: i32) -> (i32, i32) {
    %c0_i32 = arith.constant 0 : i32
    return %arg0, %arg1 : i32, i32
  }
}

</mosaic_0001>

<llo_original>
// kernel: tpu_custom_call.1
$region0: #{tpu_custom_call.1}
  #allocation0 [shape = 'u32[]', space=smem, size = 0x4, offset = 0x4, fixed_abs, tag = 'smem constant byte address 0x4 - core index']
  #allocation1 [shape = 'u32[144,128]{1,0:T(1,128)}', space=vmem, size = 0x12000, scoped, tag = 'internal scratch']
  #allocation2 [shape = 'f32[16,128]{1,0:T(8,128)}', space=vmem, size = 0x2000, scoped, tag = 'scratch operand']
  %s0 = inlined_call_operand.hbm [shape: f32[16,128], index: 0, kind: input, shape index: {}]
  %s1 = inlined_call_operand.hbm [shape: f32[16,16], index: 1, kind: input, shape index: {}]
  %s2 = inlined_call_operand.hbm [shape: f32[128,128], index: 2, kind: input, shape index: {}]
  %s3 = inlined_call_operand.vmem [shape: f32[1,128], index: 3, kind: input, shape index: {}]
  %s4 = inlined_call_operand.hbm [shape: f32[128,128], index: 4, kind: input, shape index: {}]
  %s5 = inlined_call_operand.vmem [shape: f32[1,128], index: 5, kind: input, shape index: {}]
  %s6 = inlined_call_operand.hbm [shape: f32[128,128], index: 6, kind: input, shape index: {}]
  %s7 = inlined_call_operand.vmem [shape: f32[1,128], index: 7, kind: input, shape index: {}]
  %s8 = inlined_call_operand.hbm [shape: f32[16,128], index: 8, kind: output, shape index: {}]
  %s9 = sld [smem:[#allocation0]]
  $region66: #{tpu_custom_call.1} parent=0
    _
  %s11 = ssub.s32 1, %s9
  %s12 = scalar_select 0, %s11, %s9
  $region1: #{tpu_custom_call.1} parent=0
    #allocation3 [shape = 'u8[8192]{0}', space=vmem, size = 0x2000, scoped, tag = 'input window, operand 0, single buffered']
    #allocation4 [shape = 's32[1]{0}', space=sflag, size = 0x4, scoped, tag = 'scoped memory for tpu_custom_call.1']
    #allocation5 [shape = 's32[1]{0}', space=sflag, size = 0x4, scoped, tag = 'scoped memory for tpu_custom_call.1']
    #allocation6 [shape = 'u8[8192]{0}', space=vmem, size = 0x2000, scoped, tag = 'input window, operand 1, single buffered']
    #allocation7 [shape = 's32[1]{0}', space=sflag, size = 0x4, scoped, tag = 'scoped memory for tpu_custom_call.1']
    #allocation8 [shape = 'u8[65536]{0}', space=vmem, size = 0x10000, scoped, tag = 'input window, operand 2, single buffered']
    #allocation9 [shape = 'u8[65536]{0}', space=vmem, size = 0x10000, scoped, tag = 'input window, operand 4, single buffered']
    #allocation10 [shape = 's32[1]{0}', space=sflag, size = 0x4, scoped, tag = 'scoped memory for tpu_custom_call.1']
    #allocation11 [shape = 'u8[65536]{0}', space=vmem, size = 0x10000, scoped, tag = 'input window, operand 6, single buffered']
    #allocation12 [shape = 'u8[8192]{0}', space=vmem, size = 0x2000, scoped, tag = 'output window, operand 0, single buffered']
    %13 = vsyncpa [#allocation4], 0
    %14 = vsyncpa [#allocation7], 0
    %15 = vsyncpa [#allocation10], 0
    %16 = vsyncpa [#allocation5], 0
    // Predicated region
    $region2: #{tpu_custom_call.1} parent=1 // pred_check
      _
    $region3: #{tpu_custom_call.1} parent=1 // pred_check_branch
      %18 = sbr.rel (0) target = $region5
    $region4: #{tpu_custom_call.1} parent=1 // pred_region
      %s20 = ssub.s32 256, 256
      %21 = vsyncadd [#allocation4], %s20
      %s22 = sshll.u32 [#allocation3], 4
      %s23 = int_to_ptr.vmem [resolvable:$true] %s22
      %28 = dma.hbm_to_vmem [thread:$0]  %s0, 256, %s23, [#allocation4], 128, 128, 8
    $region5: #{tpu_custom_call.1} parent=1 // pred_fallthru
      _
    // Predicated region
    $region6: #{tpu_custom_call.1} parent=1 // pred_check
      _
    $region7: #{tpu_custom_call.1} parent=1 // pred_check_branch
      %30 = sbr.rel (0) target = $region9
    $region8: #{tpu_custom_call.1} parent=1 // pred_region
      %s32 = ssub.s32 256, 256
      %33 = vsyncadd [#allocation7], %s32
      %s34 = sshll.u32 [#allocation6], 4
      %s35 = int_to_ptr.vmem [resolvable:$true] %s34
      %40 = dma.hbm_to_vmem [thread:$0]  %s1, 256, %s35, [#allocation7], 128, 128, 8
    $region9: #{tpu_custom_call.1} parent=1 // pred_fallthru
      _
    // Predicated region
    $region10: #{tpu_custom_call.1} parent=1 // pred_check
      _
    $region11: #{tpu_custom_call.1} parent=1 // pred_check_branch
      %42 = sbr.rel (0) target = $region13
    $region12: #{tpu_custom_call.1} parent=1 // pred_region
      %s44 = ssub.s32 2048, 2048
      %45 = vsyncadd [#allocation7], %s44
      %s46 = sshll.u32 [#allocation8], 4
      %s47 = int_to_ptr.vmem [resolvable:$true] %s46
      %52 = dma.hbm_to_vmem [thread:$0]  %s2, 2048, %s47, [#allocation7], 128, 128, 8
    $region13: #{tpu_custom_call.1} parent=1 // pred_fallthru
      _
    // Predicated region
    $region14: #{tpu_custom_call.1} parent=1 // pred_check
      _
    $region15: #{tpu_custom_call.1} parent=1 // pred_check_branch
      %54 = sbr.rel (0) target = $region17
    $region16: #{tpu_custom_call.1} parent=1 // pred_region
      _
    $region17: #{tpu_custom_call.1} parent=1 // pred_fallthru
      _
    // Predicated region
    $region18: #{tpu_custom_call.1} parent=1 // pred_check
      _
    $region19: #{tpu_custom_call.1} parent=1 // pred_check_branch
      %56 = sbr.rel (0) target = $region21
    $region20: #{tpu_custom_call.1} parent=1 // pred_region
      %s58 = ssub.s32 2048, 2048
      %59 = vsyncadd [#allocation10], %s58
      %s60 = sshll.u32 [#allocation9], 4
      %s61 = int_to_ptr.vmem [resolvable:$true] %s60
      %66 = dma.hbm_to_vmem [thread:$0]  %s4, 2048, %s61, [#allocation10], 128, 128, 8
    $region21: #{tpu_custom_call.1} parent=1 // pred_fallthru
      _
    // Predicated region
    $region22: #{tpu_custom_call.1} parent=1 // pred_check
      _
    $region23: #{tpu_custom_call.1} parent=1 // pred_check_branch
      %68 = sbr.rel (0) target = $region25
    $region24: #{tpu_custom_call.1} parent=1 // pred_region
      _
    $region25: #{tpu_custom_call.1} parent=1 // pred_fallthru
      _
    // Predicated region
    $region26: #{tpu_custom_call.1} parent=1 // pred_check
      _
    $region27: #{tpu_custom_call.1} parent=1 // pred_check_branch
      %70 = sbr.rel (0) target = $region29
    $region28: #{tpu_custom_call.1} parent=1 // pred_region
      %s72 = ssub.s32 2048, 2048
      %73 = vsyncadd [#allocation10], %s72
      %s74 = sshll.u32 [#allocation11], 4
      %s75 = int_to_ptr.vmem [resolvable:$true] %s74
      %80 = dma.hbm_to_vmem [thread:$0]  %s6, 2048, %s75, [#allocation10], 128, 128, 8
    $region29: #{tpu_custom_call.1} parent=1 // pred_fallthru
      _
    // Predicated region
    $region30: #{tpu_custom_call.1} parent=1 // pred_check
      _
    $region31: #{tpu_custom_call.1} parent=1 // pred_check_branch
      %82 = sbr.rel (0) target = $region33
    $region32: #{tpu_custom_call.1} parent=1 // pred_region
      _
    $region33: #{tpu_custom_call.1} parent=1 // pred_fallthru
      _
    // Predicated region
    $region34: #{tpu_custom_call.1} parent=1 // pred_check
      _
    $region35: #{tpu_custom_call.1} parent=1 // pred_check_branch
      %84 = sbr.rel (0) target = $region37
    $region36: #{tpu_custom_call.1} parent=1 // pred_region
      %85 = dma.done [#allocation4], 256
    $region37: #{tpu_custom_call.1} parent=1 // pred_fallthru
      _
    // Predicated region
    $region38: #{tpu_custom_call.1} parent=1 // pred_check
      _
    $region39: #{tpu_custom_call.1} parent=1 // pred_check_branch
      %87 = sbr.rel (0) target = $region41
    $region40: #{tpu_custom_call.1} parent=1 // pred_region
      %88 = dma.done [#allocation7], 256
    $region41: #{tpu_custom_call.1} parent=1 // pred_fallthru
      _
    // Predicated region
    $region42: #{tpu_custom_call.1} parent=1 // pred_check
      _
    $region43: #{tpu_custom_call.1} parent=1 // pred_check_branch
      %90 = sbr.rel (0) target = $region45
    $region44: #{tpu_custom_call.1} parent=1 // pred_region
      %91 = dma.done [#allocation7], 2048
    $region45: #{tpu_custom_call.1} parent=1 // pred_fallthru
      _
    // Predicated region
    $region46: #{tpu_custom_call.1} parent=1 // pred_check
      _
    $region47: #{tpu_custom_call.1} parent=1 // pred_check_branch
      %93 = sbr.rel (0) target = $region49
    $region48: #{tpu_custom_call.1} parent=1 // pred_region
      %94 = dma.done [#allocation10], 2048
    $region49: #{tpu_custom_call.1} parent=1 // pred_fallthru
      _
    // Predicated region
    $region50: #{tpu_custom_call.1} parent=1 // pred_check
      _
    $region51: #{tpu_custom_call.1} parent=1 // pred_check_branch
      %96 = sbr.rel (0) target = $region53
    $region52: #{tpu_custom_call.1} parent=1 // pred_region
      %97 = dma.done [#allocation10], 2048
    $region53: #{tpu_custom_call.1} parent=1 // pred_fallthru
      _
    %p98 = scmp.eq.s32.totalorder 0, 0
    // Predicated region
    $region54: #{tpu_custom_call.1} parent=1 // pred_check
      %p99 = pneg %p98
    $region55: #{tpu_custom_call.1} parent=1 // pred_check_branch
      %101 = sbr.rel (%p99) target = $region57
    $region56: #{tpu_custom_call.1} parent=1 // pred_region
      %v102 = vld [vmem:[#allocation3] sm:$0xff]
      %v103 = vld [vmem:[#allocation3 + $0x8] sm:$0xff]
      %v104 = vld [vmem:[#allocation6] sm:$0xff]
      %v105 = vld [vmem:[#allocation6 + $0x8] sm:$0xff]
      %vm106 = vcmask 130048
      %v108 = vsel %vm106, %v104, 0
      %v111 = vsel %vm106, %v105, 0
      %113 = vmatprep.subr.mxu0 0.0
      %114 = vmatpush1.msra.mxu0 %v102
      %115 = vmatprep.subr.mxu0 0.0
      %116 = vmatpush1.msra.mxu0 %v103
      %117 = vmatprep.subr.mxu0 0.0
      %118 = vmatpush1.msra.mxu0 0.0
      %119 = vmatprep.subr.mxu0 0.0
      %120 = vmatpush1.msra.mxu0 0.0
      %121 = vmatprep.subr.mxu0 0.0
      %122 = vmatpush1.msra.mxu0 0.0
      %123 = vmatprep.subr.mxu0 0.0
      %124 = vmatpush1.msra.mxu0 0.0
      %125 = vmatprep.subr.mxu0 0.0
      %126 = vmatpush1.msra.mxu0 0.0
      %127 = vmatprep.subr.mxu0 0.0
      %128 = vmatpush1.msra.mxu0 0.0
      %129 = vmatprep.subr.mxu0 0.0
      %130 = vmatpush1.msra.mxu0 0.0
      %131 = vmatprep.subr.mxu0 0.0
      %132 = vmatpush1.msra.mxu0 0.0
      %133 = vmatprep.subr.mxu0 0.0
      %134 = vmatpush1.msra.mxu0 0.0
      %135 = vmatprep.subr.mxu0 0.0
      %136 = vmatpush1.msra.mxu0 0.0
      %137 = vmatprep.subr.mxu0 0.0
      %138 = vmatpush1.msra.mxu0 0.0
      %139 = vmatprep.subr.mxu0 0.0
      %140 = vmatpush1.msra.mxu0 0.0
      %141 = vmatprep.subr.mxu0 0.0
      %142 = vmatpush1.msra.mxu0 0.0
      %143 = vmatprep.subr.mxu0 0.0
      %144 = vmatpush1.msra.mxu0 0.0
      %145 = vmatprep.subr.mxu0 0.0
      %146 = vmatpush1.msra.mxu0 0.0
      %147 = vmatprep.subr.mxu0 0.0
      %148 = vmatpush1.msra.mxu0 0.0
      %149 = vmatprep.subr.mxu0 0.0
      %150 = vmatpush1.msra.mxu0 0.0
      %151 = vmatprep.subr.mxu0 0.0
      %152 = vmatpush1.msra.mxu0 0.0
      %153 = vmatprep.subr.mxu0 0.0
      %154 = vmatpush1.msra.mxu0 0.0
      %155 = vmatprep.subr.mxu0 0.0
      %156 = vmatpush1.msra.mxu0 0.0
      %157 = vmatprep.subr.mxu0 0.0
      %158 = vmatpush1.msra.mxu0 0.0
      %159 = vmatprep.subr.mxu0 0.0
      %160 = vmatpush1.msra.mxu0 0.0
      %161 = vmatprep.subr.mxu0 0.0
      %162 = vmatpush1.msra.mxu0 0.0
      %163 = vmatprep.subr.mxu0 0.0
      %164 = vmatpush1.msra.mxu0 0.0
      %165 = vmatprep.subr.mxu0 0.0
      %166 = vmatpush1.msra.mxu0 0.0
      %167 = vmatprep.subr.mxu0 0.0
      %168 = vmatpush1.msra.mxu0 0.0
      %169 = vmatprep.subr.mxu0 0.0
      %170 = vmatpush1.msra.mxu0 0.0
      %171 = vmatprep.subr.mxu0 0.0
      %172 = vmatpush1.msra.mxu0 0.0
      %173 = vmatprep.subr.mxu0 0.0
      %174 = vmatpush1.msra.mxu0 0.0
      %175 = vmatprep.subr.mxu0 0.0
      %176 = vmatpush1.msra.mxu0 0.0
      %177 = vmatprep.mubr.f32.mxu0 0.0
      %178 = vmatmul.mubr.f32.gmra.mrb[0].mxu0 %v108
      %v179 = vpop.f32.mrb[0].mxu0
      %v180 = vadd.f32 0.0, %v179
      %v181 = vpop.f32.mrb[0].mxu0
      %182 = vmatprep.mubr.f32.mxu0 0.0
      %183 = vmatmul.mubr.f32.gmra.mrb[0].mxu0 %v111
      %v184 = vpop.f32.mrb[0].mxu0
      %v185 = vadd.f32 0.0, %v184
      %v186 = vpop.f32.mrb[0].mxu0
      %187 = vdwg.mxu0
      %v188 = vadd.f32 %v102, %v180
      %v189 = vadd.f32 %v103, %v185
      %v190 = vld [vmem:[#allocation8] sm:$0xff]
      %v191 = vld [vmem:[#allocation8 + $0x8] sm:$0xff]
      %v192 = vld [vmem:[#allocation8 + $0x10] sm:$0xff]
      %v193 = vld [vmem:[#allocation8 + $0x18] sm:$0xff]
      %v194 = vld [vmem:[#allocation8 + $0x20] sm:$0xff]
      %v195 = vld [vmem:[#allocation8 + $0x28] sm:$0xff]
      %v196 = vld [vmem:[#allocation8 + $0x30] sm:$0xff]
      %v197 = vld [vmem:[#allocation8 + $0x38] sm:$0xff]
      %v198 = vld [vmem:[#allocation8 + $0x40] sm:$0xff]
      %v199 = vld [vmem:[#allocation8 + $0x48] sm:$0xff]
      %v200 = vld [vmem:[#allocation8 + $0x50] sm:$0xff]
      %v201 = vld [vmem:[#allocation8 + $0x58] sm:$0xff]
      %v202 = vld [vmem:[#allocation8 + $0x60] sm:$0xff]
      %v203 = vld [vmem:[#allocation8 + $0x68] sm:$0xff]
      %v204 = vld [vmem:[#allocation8 + $0x70] sm:$0xff]
      %v205 = vld [vmem:[#allocation8 + $0x78] sm:$0xff]
      %v206 = vld [vmem:[%s3] sm:$0x1]
      %v208 = vlaneseq
      %v209 = vshrl.u32 %v208, 7
      %v210 = vsub.s32 0, %v209
      %v211 = vrot.slane %v206, %v210
      %213 = vmatprep.subr.mxu0 0.0
      %214 = vmatpush1.msra.mxu0 %v190
      %215 = vmatprep.subr.mxu0 0.0
      %216 = vmatpush1.msra.mxu0 %v191
      %217 = vmatprep.subr.mxu0 0.0
      %218 = vmatpush1.msra.mxu0 %v192
      %219 = vmatprep.subr.mxu0 0.0
      %220 = vmatpush1.msra.mxu0 %v193
      %221 = vmatprep.subr.mxu0 0.0
      %222 = vmatpush1.msra.mxu0 %v194
      %223 = vmatprep.subr.mxu0 0.0
      %224 = vmatpush1.msra.mxu0 %v195
      %225 = vmatprep.subr.mxu0 0.0
      %226 = vmatpush1.msra.mxu0 %v196
      %227 = vmatprep.subr.mxu0 0.0
      %228 = vmatpush1.msra.mxu0 %v197
      %229 = vmatprep.subr.mxu0 0.0
      %230 = vmatpush1.msra.mxu0 %v198
      %231 = vmatprep.subr.mxu0 0.0
      %232 = vmatpush1.msra.mxu0 %v199
      %233 = vmatprep.subr.mxu0 0.0
      %234 = vmatpush1.msra.mxu0 %v200
      %235 = vmatprep.subr.mxu0 0.0
      %236 = vmatpush1.msra.mxu0 %v201
      %237 = vmatprep.subr.mxu0 0.0
      %238 = vmatpush1.msra.mxu0 %v202
      %239 = vmatprep.subr.mxu0 0.0
      %240 = vmatpush1.msra.mxu0 %v203
      %241 = vmatprep.subr.mxu0 0.0
      %242 = vmatpush1.msra.mxu0 %v204
      %243 = vmatprep.subr.mxu0 0.0
      %244 = vmatpush1.msra.mxu0 %v205
      %245 = vmatprep.subr.mxu0 0.0
      %246 = vmatpush1.msra.mxu0 0.0
      %247 = vmatprep.subr.mxu0 0.0
      %248 = vmatpush1.msra.mxu0 0.0
      %249 = vmatprep.subr.mxu0 0.0
      %250 = vmatpush1.msra.mxu0 0.0
      %251 = vmatprep.subr.mxu0 0.0
      %252 = vmatpush1.msra.mxu0 0.0
      %253 = vmatprep.subr.mxu0 0.0
      %254 = vmatpush1.msra.mxu0 0.0
      %255 = vmatprep.subr.mxu0 0.0
      %256 = vmatpush1.msra.mxu0 0.0
      %257 = vmatprep.subr.mxu0 0.0
      %258 = vmatpush1.msra.mxu0 0.0
      %259 = vmatprep.subr.mxu0 0.0
      %260 = vmatpush1.msra.mxu0 0.0
      %261 = vmatprep.subr.mxu0 0.0
      %262 = vmatpush1.msra.mxu0 0.0
      %263 = vmatprep.subr.mxu0 0.0
      %264 = vmatpush1.msra.mxu0 0.0
      %265 = vmatprep.subr.mxu0 0.0
      %266 = vmatpush1.msra.mxu0 0.0
      %267 = vmatprep.subr.mxu0 0.0
      %268 = vmatpush1.msra.mxu0 0.0
      %269 = vmatprep.subr.mxu0 0.0
      %270 = vmatpush1.msra.mxu0 0.0
      %271 = vmatprep.subr.mxu0 0.0
      %272 = vmatpush1.msra.mxu0 0.0
      %273 = vmatprep.subr.mxu0 0.0
      %274 = vmatpush1.msra.mxu0 0.0
      %275 = vmatprep.subr.mxu0 0.0
      %276 = vmatpush1.msra.mxu0 0.0
      %277 = vmatprep.mubr.f32.mxu0 0.0
      %278 = vmatmul.mubr.f32.gmra.mrb[0].mxu0 %v188
      %v279 = vpop.f32.mrb[0].mxu0
      %v280 = vadd.f32 %v211, %v279
      %v281 = vpop.f32.mrb[0].mxu0
      %282 = vmatprep.mubr.f32.mxu0 0.0
      %283 = vmatmul.mubr.f32.gmra.mrb[0].mxu0 %v189
      %v284 = vpop.f32.mrb[0].mxu0
      %v285 = vadd.f32 %v211, %v284
      %v286 = vpop.f32.mrb[0].mxu0
      %287 = vdwg.mxu0
      %v288 = vtanh.pop %v280
      %v289 = vtanh.pop %v285
      %v290 = vld [vmem:[#allocation9] sm:$0xff]
      %v291 = vld [vmem:[#allocation9 + $0x8] sm:$0xff]
      %v292 = vld [vmem:[#allocation9 + $0x10] sm:$0xff]
      %v293 = vld [vmem:[#allocation9 + $0x18] sm:$0xff]
      %v294 = vld [vmem:[#allocation9 + $0x20] sm:$0xff]
      %v295 = vld [vmem:[#allocation9 + $0x28] sm:$0xff]
      %v296 = vld [vmem:[#allocation9 + $0x30] sm:$0xff]
      %v297 = vld [vmem:[#allocation9 + $0x38] sm:$0xff]
      %v298 = vld [vmem:[#allocation9 + $0x40] sm:$0xff]
      %v299 = vld [vmem:[#allocation9 + $0x48] sm:$0xff]
      %v300 = vld [vmem:[#allocation9 + $0x50] sm:$0xff]
      %v301 = vld [vmem:[#allocation9 + $0x58] sm:$0xff]
      %v302 = vld [vmem:[#allocation9 + $0x60] sm:$0xff]
      %v303 = vld [vmem:[#allocation9 + $0x68] sm:$0xff]
      %v304 = vld [vmem:[#allocation9 + $0x70] sm:$0xff]
      %v305 = vld [vmem:[#allocation9 + $0x78] sm:$0xff]
      %v306 = vld [vmem:[%s5] sm:$0x1]
      %v308 = vlaneseq
      %v309 = vshrl.u32 %v308, 7
      %v310 = vsub.s32 0, %v309
      %v311 = vrot.slane %v306, %v310
      %313 = vmatprep.subr.mxu0 0.0
      %314 = vmatpush1.msra.mxu0 %v290
      %315 = vmatprep.subr.mxu0 0.0
      %316 = vmatpush1.msra.mxu0 %v291
      %317 = vmatprep.subr.mxu0 0.0
      %318 = vmatpush1.msra.mxu0 %v292
      %319 = vmatprep.subr.mxu0 0.0
      %320 = vmatpush1.msra.mxu0 %v293
      %321 = vmatprep.subr.mxu0 0.0
      %322 = vmatpush1.msra.mxu0 %v294
      %323 = vmatprep.subr.mxu0 0.0
      %324 = vmatpush1.msra.mxu0 %v295
      %325 = vmatprep.subr.mxu0 0.0
      %326 = vmatpush1.msra.mxu0 %v296
      %327 = vmatprep.subr.mxu0 0.0
      %328 = vmatpush1.msra.mxu0 %v297
      %329 = vmatprep.subr.mxu0 0.0
      %330 = vmatpush1.msra.mxu0 %v298
      %331 = vmatprep.subr.mxu0 0.0
      %332 = vmatpush1.msra.mxu0 %v299
      %333 = vmatprep.subr.mxu0 0.0
      %334 = vmatpush1.msra.mxu0 %v300
      %335 = vmatprep.subr.mxu0 0.0
      %336 = vmatpush1.msra.mxu0 %v301
      %337 = vmatprep.subr.mxu0 0.0
      %338 = vmatpush1.msra.mxu0 %v302
      %339 = vmatprep.subr.mxu0 0.0
      %340 = vmatpush1.msra.mxu0 %v303
      %341 = vmatprep.subr.mxu0 0.0
      %342 = vmatpush1.msra.mxu0 %v304
      %343 = vmatprep.subr.mxu0 0.0
      %344 = vmatpush1.msra.mxu0 %v305
      %345 = vmatprep.subr.mxu0 0.0
      %346 = vmatpush1.msra.mxu0 0.0
      %347 = vmatprep.subr.mxu0 0.0
      %348 = vmatpush1.msra.mxu0 0.0
      %349 = vmatprep.subr.mxu0 0.0
      %350 = vmatpush1.msra.mxu0 0.0
      %351 = vmatprep.subr.mxu0 0.0
      %352 = vmatpush1.msra.mxu0 0.0
      %353 = vmatprep.subr.mxu0 0.0
      %354 = vmatpush1.msra.mxu0 0.0
      %355 = vmatprep.subr.mxu0 0.0
      %356 = vmatpush1.msra.mxu0 0.0
      %357 = vmatprep.subr.mxu0 0.0
      %358 = vmatpush1.msra.mxu0 0.0
      %359 = vmatprep.subr.mxu0 0.0
      %360 = vmatpush1.msra.mxu0 0.0
      %361 = vmatprep.subr.mxu0 0.0
      %362 = vmatpush1.msra.mxu0 0.0
      %363 = vmatprep.subr.mxu0 0.0
      %364 = vmatpush1.msra.mxu0 0.0
      %365 = vmatprep.subr.mxu0 0.0
      %366 = vmatpush1.msra.mxu0 0.0
      %367 = vmatprep.subr.mxu0 0.0
      %368 = vmatpush1.msra.mxu0 0.0
      %369 = vmatprep.subr.mxu0 0.0
      %370 = vmatpush1.msra.mxu0 0.0
      %371 = vmatprep.subr.mxu0 0.0
      %372 = vmatpush1.msra.mxu0 0.0
      %373 = vmatprep.subr.mxu0 0.0
      %374 = vmatpush1.msra.mxu0 0.0
      %375 = vmatprep.subr.mxu0 0.0
      %376 = vmatpush1.msra.mxu0 0.0
      %377 = vmatprep.mubr.f32.mxu0 0.0
      %378 = vmatmul.mubr.f32.gmra.mrb[0].mxu0 %v288
      %v379 = vpop.f32.mrb[0].mxu0
      %v380 = vadd.f32 %v311, %v379
      %v381 = vpop.f32.mrb[0].mxu0
      %382 = vmatprep.mubr.f32.mxu0 0.0
      %383 = vmatmul.mubr.f32.gmra.mrb[0].mxu0 %v289
      %v384 = vpop.f32.mrb[0].mxu0
      %v385 = vadd.f32 %v311, %v384
      %v386 = vpop.f32.mrb[0].mxu0
      %387 = vdwg.mxu0
      %v388 = vadd.f32 %v188, %v380
      %v389 = vadd.f32 %v189, %v385
      %390 = vst [vmem:[#allocation2] sm:$0xff] %v388
      %391 = vst [vmem:[#allocation2 + $0x8] sm:$0xff] %v389
    $region57: #{tpu_custom_call.1} parent=1 // pred_fallthru
      _
    %v392 = vld [vmem:[#allocation2] sm:$0xff]
    %v393 = vld [vmem:[#allocation2 + $0x8] sm:$0xff]
    %v394 = vld [vmem:[#allocation11] sm:$0xff]
    %v395 = vld [vmem:[#allocation11 + $0x8] sm:$0xff]
    %v396 = vld [vmem:[#allocation11 + $0x10] sm:$0xff]
    %v397 = vld [vmem:[#allocation11 + $0x18] sm:$0xff]
    %v398 = vld [vmem:[#allocation11 + $0x20] sm:$0xff]
    %v399 = vld [vmem:[#allocation11 + $0x28] sm:$0xff]
    %v400 = vld [vmem:[#allocation11 + $0x30] sm:$0xff]
    %v401 = vld [vmem:[#allocation11 + $0x38] sm:$0xff]
    %v402 = vld [vmem:[#allocation11 + $0x40] sm:$0xff]
    %v403 = vld [vmem:[#allocation11 + $0x48] sm:$0xff]
    %v404 = vld [vmem:[#allocation11 + $0x50] sm:$0xff]
    %v405 = vld [vmem:[#allocation11 + $0x58] sm:$0xff]
    %v406 = vld [vmem:[#allocation11 + $0x60] sm:$0xff]
    %v407 = vld [vmem:[#allocation11 + $0x68] sm:$0xff]
    %v408 = vld [vmem:[#allocation11 + $0x70] sm:$0xff]
    %v409 = vld [vmem:[#allocation11 + $0x78] sm:$0xff]
    %v410 = vld [vmem:[%s7] sm:$0x1]
    %v412 = vlaneseq
    %v413 = vshrl.u32 %v412, 7
    %v414 = vsub.s32 0, %v413
    %v415 = vrot.slane %v410, %v414
    %417 = vmatprep.subr.mxu0 0.0
    %418 = vmatpush1.msra.mxu0 %v394
    %419 = vmatprep.subr.mxu0 0.0
    %420 = vmatpush1.msra.mxu0 %v395
    %421 = vmatprep.subr.mxu0 0.0
    %422 = vmatpush1.msra.mxu0 %v396
    %423 = vmatprep.subr.mxu0 0.0
    %424 = vmatpush1.msra.mxu0 %v397
    %425 = vmatprep.subr.mxu0 0.0
    %426 = vmatpush1.msra.mxu0 %v398
    %427 = vmatprep.subr.mxu0 0.0
    %428 = vmatpush1.msra.mxu0 %v399
    %429 = vmatprep.subr.mxu0 0.0
    %430 = vmatpush1.msra.mxu0 %v400
    %431 = vmatprep.subr.mxu0 0.0
    %432 = vmatpush1.msra.mxu0 %v401
    %433 = vmatprep.subr.mxu0 0.0
    %434 = vmatpush1.msra.mxu0 %v402
    %435 = vmatprep.subr.mxu0 0.0
    %436 = vmatpush1.msra.mxu0 %v403
    %437 = vmatprep.subr.mxu0 0.0
    %438 = vmatpush1.msra.mxu0 %v404
    %439 = vmatprep.subr.mxu0 0.0
    %440 = vmatpush1.msra.mxu0 %v405
    %441 = vmatprep.subr.mxu0 0.0
    %442 = vmatpush1.msra.mxu0 %v406
    %443 = vmatprep.subr.mxu0 0.0
    %444 = vmatpush1.msra.mxu0 %v407
    %445 = vmatprep.subr.mxu0 0.0
    %446 = vmatpush1.msra.mxu0 %v408
    %447 = vmatprep.subr.mxu0 0.0
    %448 = vmatpush1.msra.mxu0 %v409
    %449 = vmatprep.subr.mxu0 0.0
    %450 = vmatpush1.msra.mxu0 0.0
    %451 = vmatprep.subr.mxu0 0.0
    %452 = vmatpush1.msra.mxu0 0.0
    %453 = vmatprep.subr.mxu0 0.0
    %454 = vmatpush1.msra.mxu0 0.0
    %455 = vmatprep.subr.mxu0 0.0
    %456 = vmatpush1.msra.mxu0 0.0
    %457 = vmatprep.subr.mxu0 0.0
    %458 = vmatpush1.msra.mxu0 0.0
    %459 = vmatprep.subr.mxu0 0.0
    %460 = vmatpush1.msra.mxu0 0.0
    %461 = vmatprep.subr.mxu0 0.0
    %462 = vmatpush1.msra.mxu0 0.0
    %463 = vmatprep.subr.mxu0 0.0
    %464 = vmatpush1.msra.mxu0 0.0
    %465 = vmatprep.subr.mxu0 0.0
    %466 = vmatpush1.msra.mxu0 0.0
    %467 = vmatprep.subr.mxu0 0.0
    %468 = vmatpush1.msra.mxu0 0.0
    %469 = vmatprep.subr.mxu0 0.0
    %470 = vmatpush1.msra.mxu0 0.0
    %471 = vmatprep.subr.mxu0 0.0
    %472 = vmatpush1.msra.mxu0 0.0
    %473 = vmatprep.subr.mxu0 0.0
    %474 = vmatpush1.msra.mxu0 0.0
    %475 = vmatprep.subr.mxu0 0.0
    %476 = vmatpush1.msra.mxu0 0.0
    %477 = vmatprep.subr.mxu0 0.0
    %478 = vmatpush1.msra.mxu0 0.0
    %479 = vmatprep.subr.mxu0 0.0
    %480 = vmatpush1.msra.mxu0 0.0
    %481 = vmatprep.mubr.f32.mxu0 0.0
    %482 = vmatmul.mubr.f32.gmra.mrb[0].mxu0 %v392
    %v483 = vpop.f32.mrb[0].mxu0
    %v484 = vadd.f32 %v415, %v483
    %v485 = vpop.f32.mrb[0].mxu0
    %486 = vmatprep.mubr.f32.mxu0 0.0
    %487 = vmatmul.mubr.f32.gmra.mrb[0].mxu0 %v393
    %v488 = vpop.f32.mrb[0].mxu0
    %v489 = vadd.f32 %v415, %v488
    %v490 = vpop.f32.mrb[0].mxu0
    %491 = vdwg.mxu0
    %492 = vst [vmem:[#allocation12] sm:$0xff] %v484
    %493 = vst [vmem:[#allocation12 + $0x8] sm:$0xff] %v489
    // Predicated region
    $region58: #{tpu_custom_call.1} parent=1 // pred_check
      _
    $region59: #{tpu_custom_call.1} parent=1 // pred_check_branch
      %495 = sbr.rel (0) target = $region61
    $region60: #{tpu_custom_call.1} parent=1 // pred_region
      %s497 = ssub.s32 256, 256
      %498 = vsyncadd [#allocation5], %s497
      %s499 = sshll.u32 [#allocation12], 4
      %s500 = int_to_ptr.vmem [resolvable:$true] %s499
      %505 = dma.vmem_to_hbm [thread:$0]  %s500, 256, %s8, [#allocation5], 128, 128, 8
    $region61: #{tpu_custom_call.1} parent=1 // pred_fallthru
      _
    // Predicated region
    $region62: #{tpu_custom_call.1} parent=1 // pred_check
      _
    $region63: #{tpu_custom_call.1} parent=1 // pred_check_branch
      %507 = sbr.rel (0) target = $region65
    $region64: #{tpu_custom_call.1} parent=1 // pred_region
      %508 = dma.done [#allocation5], 256
    $region65: #{tpu_custom_call.1} parent=1 // pred_fallthru
      _
    %509 = vsyncpa [#allocation4], 1
    %510 = vsyncpa [#allocation7], 1
    %511 = vsyncpa [#allocation10], 1
    %512 = vsyncpa [#allocation5], 1

</llo_original>
